<compile_context>
chip_gen: v5e
topology: v5e:2x2
jax: 0.10.0
libtpu: 0.0.40
codegen_flags: <defaults>
</compile_context>

<pallas_src>
import numpy as np
import jax
import jax.numpy as jnp
from jax.experimental import pallas as pl
from jax.experimental.pallas import tpu as pltpu

EMBED_DIM = 10
LANES = 128
SUBLANES = 8
MAX_TB = 512


def _round_up(x, m):
    return ((x + m - 1) // m) * m


def _group_embed_kernel(gidx_ref, tbl_ref, out_ref):
    """Fused lookup + concat for one batch tile.

    gidx_ref : (TB, C)          int32 -- per-row indices, pre-offset into stacked table rows
    tbl_ref  : (Vsum, CDpad)    f32   -- block-diagonal stacked table, lane-padded to 128
    out_ref  : (TB, CDpad)      f32   -- final torch.cat layout (padding columns are zero)
    """
    gidx = gidx_ref[...]                                   # (TB, C) int32
    tbl = tbl_ref[...]                                     # (Vsum, CDpad) f32
    TB, C = gidx.shape
    Vsum = tbl.shape[0]

    # Multi-hot row selector: row b has C hot lanes, one per column, in disjoint
    # row ranges of the block-diagonal table -> a boolean OR is exact. Cast to the
    # matmul dtype exactly once at the end.
    iota_v = jax.lax.broadcasted_iota(jnp.int32, (TB, Vsum), 1)
    hit = iota_v == gidx[:, 0:1]
    for c in range(1, C):                                  # trace-time unroll, C is tiny
        hit = hit | (iota_v == gidx[:, c:c + 1])
    onehot = hit.astype(tbl.dtype)

    # One MXU push does lookup + concat. HIGHEST precision keeps the emulated-bf16
    # f32 path exact for 0/1 selection (each output element = 1.0 * table value).
    out_ref[...] = jnp.dot(onehot, tbl,
                           precision=jax.lax.Precision.HIGHEST,
                           preferred_element_type=jnp.float32)


def group_embedding_forward(gidx, big_table, out_width):
    """gidx: (B, C) int32 (pre-offset), big_table: (Vsum, CDpad) f32 -> (B, out_width) f32."""
    B, C = gidx.shape
    Vsum, CDpad = big_table.shape

    # Batch tile: multiple of 8 sublanes, capped so the (TB, Vsum) one-hot stays small.
    TB = min(MAX_TB, _round_up(B, SUBLANES))
    B_pad = _round_up(B, TB)
    if B_pad != B:
        gidx = jnp.pad(gidx, ((0, B_pad - B), (0, 0)))     # padded rows -> row 0 (sliced off)
    grid = (B_pad // TB,)

    # Explicit VMEM budget: resident table + double-buffered gidx/out tiles + one-hot,
    # plus headroom. Clamp so we never ask for more than v7x's physical 64 MiB.
    vmem_bytes = (Vsum * CDpad * 4                          # resident table
                  + 2 * (TB * C * 4 + TB * CDpad * 4)       # double-buffered in/out tiles
                  + TB * Vsum * 4                           # one-hot working set
                  + (4 << 20))                              # headroom
    vmem_bytes = int(min(max(vmem_bytes, 16 << 20), 64 << 20))

    out = pl.pallas_call(
        _group_embed_kernel,
        out_shape=jax.ShapeDtypeStruct((B_pad, CDpad), jnp.float32),
        grid=grid,
        in_specs=[
            pl.BlockSpec((TB, C), lambda i: (i, 0)),        # batch-tiled indices
            pl.BlockSpec((Vsum, CDpad), lambda i: (0, 0)),  # table: constant index, VMEM-resident
        ],
        out_specs=pl.BlockSpec((TB, CDpad), lambda i: (i, 0)),
        compiler_params=pltpu.CompilerParams(
            dimension_semantics=("parallel",),              # shards batch tiles across TCs on v7x
            vmem_limit_bytes=vmem_bytes),
    )(gidx, big_table)

    # Strip batch padding and the lane-padding columns back to the torch.cat width.
    return out[:B, :out_width]


def build_group_embedding(mappings, key):
    """Host-side parameter construction (mirrors nn.Embedding ~N(0,1) init).

    Returns (per_col_tables, big_table, bases):
      big_table : (Vsum, CDpad) block-diagonal stacked table, last dim padded to 128 lanes
      bases[c]  : starting row of column c's vocabulary inside big_table
    """
    cols = list(mappings.keys())
    C = len(cols)
    vocab_sizes = [len(mappings[c]) for c in cols]
    bases = np.cumsum([0] + vocab_sizes[:-1]).astype(np.int32)
    Vsum = _round_up(int(sum(vocab_sizes)), SUBLANES)       # sublane-align stacked rows
    CDpad = _round_up(C * EMBED_DIM, LANES)                 # lane-dense output columns

    col_keys = jax.random.split(key, C)
    per_col_tables = []
    big = np.zeros((Vsum, CDpad), dtype=np.float32)
    for ci, v in enumerate(vocab_sizes):
        w = jax.random.normal(col_keys[ci], (v, EMBED_DIM), dtype=jnp.float32)
        per_col_tables.append(w)
        big[bases[ci]:bases[ci] + v, ci * EMBED_DIM:(ci + 1) * EMBED_DIM] = np.asarray(w)
    return per_col_tables, jnp.asarray(big), bases


def encode_dataframe(mappings, dataframe, bases):
    """String->index glue (same role as the Python loop in the torch forward),
    plus each column's base-row offset into the stacked block-diagonal table."""
    cols = list(mappings.keys())
    B = len(next(iter(dataframe.values())))
    gidx = np.zeros((B, len(cols)), dtype=np.int32)
    for ci, col in enumerate(cols):
        raw = np.array([mappings[col][s] for s in dataframe[col]], dtype=np.int32)
        # nn.Embedding would raise on out-of-range indices; validate on the host
        # (there is no in-kernel bounds check).
        assert np.all((raw >= 0) & (raw < len(mappings[col]))), "embedding index out of range"
        gidx[:, ci] = raw + bases[ci]
    return jnp.asarray(gidx)


if __name__ == "__main__":
    # ---- Synthetic "mappings" (string -> index) and a small "dataframe" ----
    mappings = {
        "color": {s: i for i, s in enumerate(["red", "green", "blue", "black", "white"])},   # 5
        "size":  {s: i for i, s in enumerate(["xs", "s", "m", "l", "xl", "xxl", "xxxl"])},   # 7
        "brand": {s: i for i, s in enumerate([f"brand_{k}" for k in range(12)])},            # 12
    }
    cols = list(mappings.keys())
    C = len(cols)
    B = 8  # batch (rows of the dataframe)

    # Deterministic "dataframe": pick strings per column.
    dataframe = {}
    for ci, col in enumerate(cols):
        vocab = list(mappings[col].keys())
        dataframe[col] = [vocab[(3 * r + ci) % len(vocab)] for r in range(B)]

    # ---- Deterministic parameters + stacked block-diagonal (lane-padded) table ----
    key = jax.random.PRNGKey(0)
    per_col_tables, big_table, bases = build_group_embedding(mappings, key)

    # ---- String -> (offset) index glue, exactly like the torch forward ----
    gidx = encode_dataframe(mappings, dataframe, bases)

    # ---- Run the fused Pallas kernel ----
    out = group_embedding_forward(gidx, big_table, out_width=C * EMBED_DIM)
    out = jax.block_until_ready(out)
    assert out.shape == (B, C * EMBED_DIM) and out.dtype == jnp.float32

    # ---- Pure-JAX reference (torch.cat of per-column lookups along axis=1) ----
    raw_idx = np.asarray(gidx) - bases[None, :]
    ref = jnp.concatenate(
        [per_col_tables[ci][raw_idx[:, ci]] for ci in range(C)], axis=1
    )
    np.testing.assert_allclose(np.asarray(out), np.asarray(ref), rtol=1e-6, atol=1e-6)

    print("KERNEL_OK")
</pallas_src>

<mosaic_0001>
module attributes {stable_mosaic.version = 11 : i64} {
  func.func @_group_embed_kernel(%arg0: i32, %arg1: memref<8x3xi32, #tpu.memory_space<vmem>>, %arg2: memref<24x128xf32, #tpu.memory_space<vmem>>, %arg3: memref<8x128xf32, #tpu.memory_space<vmem>>) attributes {dimension_semantics = [#tpu.dimension_semantics<parallel>], iteration_bounds = array<i64: 1>, scalar_prefetch = 0 : i64, scratch_operands = 0 : i64, tpu.core_type = #tpu.core_type<tc>, window_params = [{transform_indices = @transform_0, window_bounds = array<i64: 8, 3>}, {pipeline_mode = #tpu.pipeline_mode<synchronous>, transform_indices = @transform_1, window_bounds = array<i64: 24, 128>}, {transform_indices = @transform_2, window_bounds = array<i64: 8, 128>}]} {
    %c0 = arith.constant 0 : index
    %c0_0 = arith.constant 0 : index
    %0 = vector.load %arg1[%c0, %c0_0] : memref<8x3xi32, #tpu.memory_space<vmem>>, vector<8x3xi32>
    %c0_1 = arith.constant 0 : index
    %c0_2 = arith.constant 0 : index
    %1 = vector.load %arg2[%c0_1, %c0_2] : memref<24x128xf32, #tpu.memory_space<vmem>>, vector<24x128xf32>
    %2 = tpu.iota {dimensions = array<i32: 1>} : vector<8x24xi32>
    %3 = vector.extract_strided_slice %0 {offsets = [0, 0], sizes = [8, 1], strides = [1, 1]} : vector<8x3xi32> to vector<8x1xi32>
    %4 = vector.broadcast %3 : vector<8x1xi32> to vector<8x24xi32>
    %5 = arith.cmpi eq, %2, %4 : vector<8x24xi32>
    %6 = vector.extract_strided_slice %0 {offsets = [0, 1], sizes = [8, 1], strides = [1, 1]} : vector<8x3xi32> to vector<8x1xi32>
    %7 = vector.broadcast %6 : vector<8x1xi32> to vector<8x24xi32>
    %8 = arith.cmpi eq, %2, %7 : vector<8x24xi32>
    %9 = arith.ori %5, %8 : vector<8x24xi1>
    %10 = vector.extract_strided_slice %0 {offsets = [0, 2], sizes = [8, 1], strides = [1, 1]} : vector<8x3xi32> to vector<8x1xi32>
    %11 = vector.broadcast %10 : vector<8x1xi32> to vector<8x24xi32>
    %12 = arith.cmpi eq, %2, %11 : vector<8x24xi32>
    %13 = arith.ori %9, %12 : vector<8x24xi1>
    %14 = arith.extui %13 : vector<8x24xi1> to vector<8x24xi32>
    %15 = arith.sitofp %14 : vector<8x24xi32> to vector<8x24xf32>
    %cst = arith.constant dense<0.000000e+00> : vector<8x128xf32>
    %16 = tpu.matmul %15, %1, %cst {dimension_numbers = #tpu.dot_dimension_numbers<[1], [0], [0], [1], [0, 0, 1, 1], [], []>, precision = #tpu.contract_precision<fp32>} : vector<8x24xf32>, vector<24x128xf32>, vector<8x128xf32> -> vector<8x128xf32>
    %c0_3 = arith.constant 0 : index
    %c0_4 = arith.constant 0 : index
    %17 = vector.load %arg3[%c0_3, %c0_4] : memref<8x128xf32, #tpu.memory_space<vmem>>, vector<8x128xf32>
    tpu.vector_store %arg3[%c0_3, %c0_4], %16 {strides = array<i32>} : memref<8x128xf32, #tpu.memory_space<vmem>>, vector<8x128xf32>,
    return
  }
  func.func @transform_0(%arg0: i32) -> (i32, i32) {
    %c0_i32 = arith.constant 0 : i32
    %c0_i32_0 = arith.constant 0 : i32
    return %arg0, %c0_i32 : i32, i32
  }
  func.func @transform_1(%arg0: i32) -> (i32, i32) {
    %c0_i32 = arith.constant 0 : i32
    %c0_i32_0 = arith.constant 0 : i32
    %c0_i32_1 = arith.constant 0 : i32
    return %c0_i32, %c0_i32_0 : i32, i32
  }
  func.func @transform_2(%arg0: i32) -> (i32, i32) {
    %c0_i32 = arith.constant 0 : i32
    %c0_i32_0 = arith.constant 0 : i32
    return %arg0, %c0_i32 : i32, i32
  }
}

</mosaic_0001>

<llo_original>
// kernel: tpu_custom_call.1
$region0: #{tpu_custom_call.1}
  #allocation0 [shape = 'u32[]', space=smem, size = 0x4, offset = 0x4, fixed_abs, tag = 'smem constant byte address 0x4 - core index']
  #allocation1 [shape = 'u32[72,128]{1,0:T(1,128)}', space=vmem, size = 0x9000, scoped, tag = 'internal scratch']
  %s0 = inlined_call_operand.vmem [shape: s32[8,3], index: 0, kind: input, shape index: {}]
  %s1 = inlined_call_operand.hbm [shape: f32[24,128], index: 1, kind: input, shape index: {}]
  %s2 = inlined_call_operand.hbm [shape: f32[8,128], index: 2, kind: output, shape index: {}]
  %s3 = sld [smem:[#allocation0]]
  $region22: #{tpu_custom_call.1} parent=0
    _
  %s5 = ssub.s32 1, %s3
  %s6 = scalar_select 0, %s5, %s3
  $region1: #{tpu_custom_call.1} parent=0
    #allocation2 [shape = 'u8[12288]{0}', space=vmem, size = 0x3000, scoped, tag = 'input window, operand 1, single buffered']
    #allocation3 [shape = 's32[1]{0}', space=sflag, size = 0x4, scoped, tag = 'scoped memory for tpu_custom_call.1']
    #allocation4 [shape = 's32[1]{0}', space=sflag, size = 0x4, scoped, tag = 'scoped memory for tpu_custom_call.1']
    #allocation5 [shape = 'u8[4096]{0}', space=vmem, size = 0x1000, scoped, tag = 'output window, operand 0, single buffered']
    %7 = vsyncpa [#allocation3], 0
    %8 = vsyncpa [#allocation4], 0
    // Predicated region
    $region2: #{tpu_custom_call.1} parent=1 // pred_check
      _
    $region3: #{tpu_custom_call.1} parent=1 // pred_check_branch
      %10 = sbr.rel (0) target = $region5
    $region4: #{tpu_custom_call.1} parent=1 // pred_region
      _
    $region5: #{tpu_custom_call.1} parent=1 // pred_fallthru
      _
    // Predicated region
    $region6: #{tpu_custom_call.1} parent=1 // pred_check
      _
    $region7: #{tpu_custom_call.1} parent=1 // pred_check_branch
      %12 = sbr.rel (0) target = $region9
    $region8: #{tpu_custom_call.1} parent=1 // pred_region
      %14 = vsyncadd [#allocation3], 0
      %s15 = sshll.u32 %s1, 4
      %s16 = int_to_ptr.hbm [resolvable:$true] %s15
      %s17 = sshll.u32 [#allocation2], 4
      %s18 = int_to_ptr.vmem [resolvable:$true] %s17
      %23 = dma.hbm_to_vmem [thread:$0]  %s16, 384, %s18, [#allocation3], 128, 128, 8
    $region9: #{tpu_custom_call.1} parent=1 // pred_fallthru
      _
    // Predicated region
    $region10: #{tpu_custom_call.1} parent=1 // pred_check
      _
    $region11: #{tpu_custom_call.1} parent=1 // pred_check_branch
      %25 = sbr.rel (0) target = $region13
    $region12: #{tpu_custom_call.1} parent=1 // pred_region
      %27 = dma.done [#allocation3], 384
    $region13: #{tpu_custom_call.1} parent=1 // pred_fallthru
      _
    %v28 = vld [vmem:[%s0] sm:$0xff]
    %v29 = vld [vmem:[#allocation2] sm:$0xff]
    %v30 = vld [vmem:[#allocation2 + $0x8] sm:$0xff]
    %v31 = vld [vmem:[#allocation2 + $0x10] sm:$0xff]
    %v32 = vlaneseq
    %v33 = vand.u32 %v32, 127
    %34 = vset.pattern.permute.xlu0 0
    %35 = vperm.xlu0 %34, %v28
    %v36 = vpop.permute.xlu0 %35
    %vm37 = vcmp.eq.s32.totalorder %v33, %v36
    %38 = vset.pattern.permute.xlu0 1
    %39 = vperm.xlu0 %38, %v28
    %v40 = vpop.permute.xlu0 %39
    %vm41 = vcmp.eq.s32.totalorder %v33, %v40
    %vm42 = vmor %vm37, %vm41
    %43 = vset.pattern.permute.xlu0 2
    %44 = vperm.xlu0 %43, %v28
    %v45 = vpop.permute.xlu0 %44
    %vm46 = vcmp.eq.s32.totalorder %v33, %v45
    %vm47 = vmor %vm42, %vm46
    %v48 = vsel %vm47, 1, 0
    %v49 = vcvt.s32.f32 %v48
    %vm50 = vcmask 195584
    %v52 = vsel %vm50, %v49, 0
    %54 = vmatpush.msra.mxu0 0.0
    %55 = vmatpush.msra.mxu0 0.0
    %56 = vmatpush.msra.mxu0 0.0
    %57 = vmatpush.msra.mxu0 0.0
    %58 = vmatpush.msra.mxu0 0.0
    %59 = vmatpush.msra.mxu0 0.0
    %60 = vmatpush.msra.mxu0 0.0
    %61 = vmatpush.msra.mxu0 0.0
    %62 = vmatpush.msra.mxu0 0.0
    %63 = vmatpush.msra.mxu0 0.0
    %64 = vmatpush.msra.mxu0 0.0
    %65 = vmatpush.msra.mxu0 0.0
    %66 = vmatpush.msra.mxu0 0.0
    %v67 = vand.u32 %v31, 4294901760
    %68 = vmatpush.msra.mxu0 %v67
    %v69 = vand.u32 %v30, 4294901760
    %70 = vmatpush.msra.mxu0 %v69
    %v71 = vand.u32 %v29, 4294901760
    %72 = vmatpush.msra.mxu0 %v71
    %v73 = vand.u32 %v52, 4294901760
    %v74 = vsub.f32 %v52, %v73
    %v75 = vand.u32 %v74, 4294901760
    %v76 = vsub.f32 %v74, %v75
    %v77 = vand.u32 %v76, 4294901760
    %78 = vmatmul.f32.gmra.mxu0 %v77
    %v79 = vpop.f32.mrf.mxu0
    %v80 = vadd.f32 0.0, %v79
    %81 = vdwg.mxu0
    %82 = vmatpush.msra.mxu0 0.0
    %83 = vmatpush.msra.mxu0 0.0
    %84 = vmatpush.msra.mxu0 0.0
    %85 = vmatpush.msra.mxu0 0.0
    %86 = vmatpush.msra.mxu0 0.0
    %87 = vmatpush.msra.mxu0 0.0
    %88 = vmatpush.msra.mxu0 0.0
    %89 = vmatpush.msra.mxu0 0.0
    %90 = vmatpush.msra.mxu0 0.0
    %91 = vmatpush.msra.mxu0 0.0
    %92 = vmatpush.msra.mxu0 0.0
    %93 = vmatpush.msra.mxu0 0.0
    %94 = vmatpush.msra.mxu0 0.0
    %v95 = vand.u32 %v31, 4294901760
    %v96 = vsub.f32 %v31, %v95
    %v97 = vand.u32 %v96, 4294901760
    %v98 = vsub.f32 %v96, %v97
    %v99 = vand.u32 %v98, 4294901760
    %100 = vmatpush.msra.mxu0 %v99
    %v101 = vand.u32 %v30, 4294901760
    %v102 = vsub.f32 %v30, %v101
    %v103 = vand.u32 %v102, 4294901760
    %v104 = vsub.f32 %v102, %v103
    %v105 = vand.u32 %v104, 4294901760
    %106 = vmatpush.msra.mxu0 %v105
    %v107 = vand.u32 %v29, 4294901760
    %v108 = vsub.f32 %v29, %v107
    %v109 = vand.u32 %v108, 4294901760
    %v110 = vsub.f32 %v108, %v109
    %v111 = vand.u32 %v110, 4294901760
    %112 = vmatpush.msra.mxu0 %v111
    %v113 = vand.u32 %v52, 4294901760
    %114 = vmatmul.f32.gmra.mxu0 %v113
    %v115 = vpop.f32.mrf.mxu0
    %v116 = vadd.f32 %v80, %v115
    %117 = vdwg.mxu0
    %118 = vmatpush.msra.mxu0 0.0
    %119 = vmatpush.msra.mxu0 0.0
    %120 = vmatpush.msra.mxu0 0.0
    %121 = vmatpush.msra.mxu0 0.0
    %122 = vmatpush.msra.mxu0 0.0
    %123 = vmatpush.msra.mxu0 0.0
    %124 = vmatpush.msra.mxu0 0.0
    %125 = vmatpush.msra.mxu0 0.0
    %126 = vmatpush.msra.mxu0 0.0
    %127 = vmatpush.msra.mxu0 0.0
    %128 = vmatpush.msra.mxu0 0.0
    %129 = vmatpush.msra.mxu0 0.0
    %130 = vmatpush.msra.mxu0 0.0
    %v131 = vand.u32 %v31, 4294901760
    %v132 = vsub.f32 %v31, %v131
    %133 = vmatpush.msra.mxu0 %v132
    %v134 = vand.u32 %v30, 4294901760
    %v135 = vsub.f32 %v30, %v134
    %136 = vmatpush.msra.mxu0 %v135
    %v137 = vand.u32 %v29, 4294901760
    %v138 = vsub.f32 %v29, %v137
    %139 = vmatpush.msra.mxu0 %v138
    %v140 = vand.u32 %v52, 4294901760
    %v141 = vsub.f32 %v52, %v140
    %142 = vmatmul.f32.gmra.mxu0 %v141
    %v143 = vpop.f32.mrf.mxu0
    %v144 = vadd.f32 %v116, %v143
    %145 = vdwg.mxu0
    %146 = vmatpush.msra.mxu0 0.0
    %147 = vmatpush.msra.mxu0 0.0
    %148 = vmatpush.msra.mxu0 0.0
    %149 = vmatpush.msra.mxu0 0.0
    %150 = vmatpush.msra.mxu0 0.0
    %151 = vmatpush.msra.mxu0 0.0
    %152 = vmatpush.msra.mxu0 0.0
    %153 = vmatpush.msra.mxu0 0.0
    %154 = vmatpush.msra.mxu0 0.0
    %155 = vmatpush.msra.mxu0 0.0
    %156 = vmatpush.msra.mxu0 0.0
    %157 = vmatpush.msra.mxu0 0.0
    %158 = vmatpush.msra.mxu0 0.0
    %v159 = vand.u32 %v31, 4294901760
    %160 = vmatpush.msra.mxu0 %v159
    %v161 = vand.u32 %v30, 4294901760
    %162 = vmatpush.msra.mxu0 %v161
    %v163 = vand.u32 %v29, 4294901760
    %164 = vmatpush.msra.mxu0 %v163
    %v165 = vand.u32 %v52, 4294901760
    %v166 = vsub.f32 %v52, %v165
    %v167 = vand.u32 %v166, 4294901760
    %168 = vmatmul.f32.gmra.mxu0 %v167
    %v169 = vpop.f32.mrf.mxu0
    %v170 = vadd.f32 %v144, %v169
    %171 = vdwg.mxu0
    %172 = vmatpush.msra.mxu0 0.0
    %173 = vmatpush.msra.mxu0 0.0
    %174 = vmatpush.msra.mxu0 0.0
    %175 = vmatpush.msra.mxu0 0.0
    %176 = vmatpush.msra.mxu0 0.0
    %177 = vmatpush.msra.mxu0 0.0
    %178 = vmatpush.msra.mxu0 0.0
    %179 = vmatpush.msra.mxu0 0.0
    %180 = vmatpush.msra.mxu0 0.0
    %181 = vmatpush.msra.mxu0 0.0
    %182 = vmatpush.msra.mxu0 0.0
    %183 = vmatpush.msra.mxu0 0.0
    %184 = vmatpush.msra.mxu0 0.0
    %v185 = vand.u32 %v31, 4294901760
    %v186 = vsub.f32 %v31, %v185
    %v187 = vand.u32 %v186, 4294901760
    %188 = vmatpush.msra.mxu0 %v187
    %v189 = vand.u32 %v30, 4294901760
    %v190 = vsub.f32 %v30, %v189
    %v191 = vand.u32 %v190, 4294901760
    %192 = vmatpush.msra.mxu0 %v191
    %v193 = vand.u32 %v29, 4294901760
    %v194 = vsub.f32 %v29, %v193
    %v195 = vand.u32 %v194, 4294901760
    %196 = vmatpush.msra.mxu0 %v195
    %v197 = vand.u32 %v52, 4294901760
    %198 = vmatmul.f32.gmra.mxu0 %v197
    %v199 = vpop.f32.mrf.mxu0
    %v200 = vadd.f32 %v170, %v199
    %201 = vdwg.mxu0
    %202 = vmatpush.msra.mxu0 0.0
    %203 = vmatpush.msra.mxu0 0.0
    %204 = vmatpush.msra.mxu0 0.0
    %205 = vmatpush.msra.mxu0 0.0
    %206 = vmatpush.msra.mxu0 0.0
    %207 = vmatpush.msra.mxu0 0.0
    %208 = vmatpush.msra.mxu0 0.0
    %209 = vmatpush.msra.mxu0 0.0
    %210 = vmatpush.msra.mxu0 0.0
    %211 = vmatpush.msra.mxu0 0.0
    %212 = vmatpush.msra.mxu0 0.0
    %213 = vmatpush.msra.mxu0 0.0
    %214 = vmatpush.msra.mxu0 0.0
    %v215 = vand.u32 %v31, 4294901760
    %216 = vmatpush.msra.mxu0 %v215
    %v217 = vand.u32 %v30, 4294901760
    %218 = vmatpush.msra.mxu0 %v217
    %v219 = vand.u32 %v29, 4294901760
    %220 = vmatpush.msra.mxu0 %v219
    %v221 = vand.u32 %v52, 4294901760
    %222 = vmatmul.f32.gmra.mxu0 %v221
    %v223 = vpop.f32.mrf.mxu0
    %v224 = vadd.f32 %v200, %v223
    %225 = vdwg.mxu0
    %226 = vst [vmem:[#allocation5] sm:$0xff] %v224
    // Predicated region
    $region14: #{tpu_custom_call.1} parent=1 // pred_check
      _
    $region15: #{tpu_custom_call.1} parent=1 // pred_check_branch
      %228 = sbr.rel (0) target = $region17
    $region16: #{tpu_custom_call.1} parent=1 // pred_region
      %230 = vsyncadd [#allocation4], 0
      %s232 = sshll.u32 [#allocation5], 4
      %s233 = int_to_ptr.vmem [resolvable:$true] %s232
      %s234 = sshll.u32 %s2, 4
      %s235 = int_to_ptr.hbm [resolvable:$true] %s234
      %237 = dma.vmem_to_hbm [thread:$0]  %s233, 128, %s235, [#allocation4]
    $region17: #{tpu_custom_call.1} parent=1 // pred_fallthru
      _
    // Predicated region
    $region18: #{tpu_custom_call.1} parent=1 // pred_check
      _
    $region19: #{tpu_custom_call.1} parent=1 // pred_check_branch
      %239 = sbr.rel (0) target = $region21
    $region20: #{tpu_custom_call.1} parent=1 // pred_region
      %241 = dma.done [#allocation4], 128
    $region21: #{tpu_custom_call.1} parent=1 // pred_fallthru
      _
    %242 = vsyncpa [#allocation3], 1
    %243 = vsyncpa [#allocation4], 1

</llo_original>
